<compile_context>
chip_gen: v6e
topology: v6e:2x2x1
jax: 0.10.0
libtpu: 0.0.40
codegen_flags: <defaults>
</compile_context>

<pallas_src>
import jax
import jax.numpy as jnp
from jax import lax
from jax.experimental import pallas as pl
from jax.experimental.pallas import tpu as pltpu

block_size = 256          # max context (causal-mask semantics)
dropout_prob = 0.2        # TODO(synk): dropout is identity here (eval mode); a
                          # training-mode kernel would use pltpu.prng_* masking.
n_embd = 384


def _head_kernel(x_ref, wk_ref, wq_ref, wv_ref, o_ref):
    # x_ref: (Bb, T, E) bf16;  w*_ref: (E, H) bf16 (wq pre-scaled by 1/sqrt(H)).
    x = x_ref[...]
    wk = wk_ref[...]
    wq = wq_ref[...]
    wv = wv_ref[...]

    # Projections: contract the embedding dim. bf16 operands, f32 accumulate.
    def proj(w):
        return lax.dot_general(
            x, w, (((2,), (0,)), ((), ())),
            preferred_element_type=jnp.float32)          # (Bb, T, H) f32

    k = proj(wk)
    q = proj(wq)   # already carries the 1/sqrt(H) scale
    v = proj(wv)

    # Attention scores: batched q @ k^T without materializing a transpose.
    wei = lax.dot_general(
        q.astype(jnp.bfloat16), k.astype(jnp.bfloat16),
        (((2,), (2,)), ((0,), (0,))),
        preferred_element_type=jnp.float32)              # (Bb, T, T) f32

    # Causal mask (tril): positions with col > row get -inf.
    T = wei.shape[-1]
    row = lax.broadcasted_iota(jnp.int32, (T, T), 0)
    col = lax.broadcasted_iota(jnp.int32, (T, T), 1)
    wei = jnp.where((col <= row)[None, :, :], wei, -jnp.inf)

    # Softmax over keys, all in f32; reciprocal on the EUP.
    m = jnp.max(wei, axis=-1, keepdims=True)
    p = jnp.exp(wei - m)
    p = p * pl.reciprocal(jnp.sum(p, axis=-1, keepdims=True), approx=True)

    # Dropout is identity in eval mode.
    out = lax.dot_general(
        p.astype(jnp.bfloat16), v.astype(jnp.bfloat16),
        (((2,), (1,)), ((0,), (0,))),
        preferred_element_type=jnp.float32)              # (Bb, T, H) f32
    o_ref[...] = out.astype(o_ref.dtype)


def head_forward(x, wk, wq, wv, *, batch_block=None):
    """x: (B, T, n_embd) f32; wk/wq/wv: (n_embd, head_size) f32."""
    B, T, E = x.shape
    H = wk.shape[1]
    assert E == n_embd and T <= block_size

    # Process several batch elements per grid step (amortize per-step overhead).
    Bb = batch_block
    if Bb is None:
        Bb = next(d for d in range(min(B, 8), 0, -1) if B % d == 0)
    assert B % Bb == 0

    # Fold the softmax scale into wq at trace time; cast matmul operands to
    # bf16 on the host side so the HBM->VMEM DMAs are half-width too.
    scale = 1.0 / (H ** 0.5)
    x_b = x.astype(jnp.bfloat16)
    wk_b = wk.astype(jnp.bfloat16)
    wq_b = (wq * scale).astype(jnp.bfloat16)
    wv_b = wv.astype(jnp.bfloat16)

    return pl.pallas_call(
        _head_kernel,
        out_shape=jax.ShapeDtypeStruct((B, T, H), x.dtype),
        grid_spec=pltpu.PrefetchScalarGridSpec(
            num_scalar_prefetch=0,
            grid=(B // Bb,),
            in_specs=[
                pl.BlockSpec((Bb, T, E), lambda b: (b, 0, 0)),
                pl.BlockSpec((E, H), lambda b: (0, 0)),
                pl.BlockSpec((E, H), lambda b: (0, 0)),
                pl.BlockSpec((E, H), lambda b: (0, 0)),
            ],
            out_specs=pl.BlockSpec((Bb, T, H), lambda b: (b, 0, 0)),
        ),
        compiler_params=pltpu.CompilerParams(
            dimension_semantics=("parallel",)),
    )(x_b, wk_b, wq_b, wv_b)


def head_reference(x, wk, wq, wv):
    """Pure-JAX f32 reference mirroring the PyTorch forward (eval mode)."""
    B, T, E = x.shape
    H = wk.shape[1]
    k = x @ wk
    q = x @ wq
    v = x @ wv
    wei = jnp.einsum('bth,bsh->bts', q, k) / (H ** 0.5)
    mask = jnp.tril(jnp.ones((T, T), dtype=bool))
    wei = jnp.where(mask[None], wei, -jnp.inf)
    wei = jax.nn.softmax(wei, axis=2)
    return jnp.einsum('bts,bsh->bth', wei, v)


if __name__ == "__main__":
    key = jax.random.PRNGKey(0)
    B, T, head_size = 2, 8, 64

    kx, kk, kq, kv = jax.random.split(key, 4)
    x = jax.random.normal(kx, (B, T, n_embd), dtype=jnp.float32)
    # deterministic "Linear(bias=False)"-style weights, stored as (E, H)
    bound = 1.0 / (n_embd ** 0.5)
    wk = jax.random.uniform(kk, (n_embd, head_size), jnp.float32, -bound, bound)
    wq = jax.random.uniform(kq, (n_embd, head_size), jnp.float32, -bound, bound)
    wv = jax.random.uniform(kv, (n_embd, head_size), jnp.float32, -bound, bound)

    out = head_forward(x, wk, wq, wv)
    out = jax.block_until_ready(out)

    ref = head_reference(x, wk, wq, wv)
    assert out.shape == (B, T, head_size)
    # bf16 matmul operands (f32 accumulate) -> loosened tolerance vs f32 ref.
    assert jnp.allclose(out, ref, atol=2e-2, rtol=2e-2), float(
        jnp.max(jnp.abs(out - ref)))

    print("KERNEL_OK")
</pallas_src>

<mosaic_0001>
module attributes {stable_mosaic.version = 11 : i64} {
  func.func @_head_kernel(%arg0: i32, %arg1: memref<2x8x384xbf16, #tpu.memory_space<vmem>>, %arg2: memref<384x64xbf16, #tpu.memory_space<vmem>>, %arg3: memref<384x64xbf16, #tpu.memory_space<vmem>>, %arg4: memref<384x64xbf16, #tpu.memory_space<vmem>>, %arg5: memref<2x8x64xf32, #tpu.memory_space<vmem>>) attributes {dimension_semantics = [#tpu.dimension_semantics<parallel>], iteration_bounds = array<i64: 1>, scalar_prefetch = 0 : i64, scratch_operands = 0 : i64, tpu.core_type = #tpu.core_type<tc>, window_params = [{transform_indices = @transform_0, window_bounds = array<i64: 2, 8, 384>}, {pipeline_mode = #tpu.pipeline_mode<synchronous>, transform_indices = @transform_1, window_bounds = array<i64: 384, 64>}, {pipeline_mode = #tpu.pipeline_mode<synchronous>, transform_indices = @transform_2, window_bounds = array<i64: 384, 64>}, {pipeline_mode = #tpu.pipeline_mode<synchronous>, transform_indices = @transform_3, window_bounds = array<i64: 384, 64>}, {transform_indices = @transform_4, window_bounds = array<i64: 2, 8, 64>}]} {
    %c0 = arith.constant 0 : index
    %c0_0 = arith.constant 0 : index
    %c0_1 = arith.constant 0 : index
    %0 = vector.load %arg1[%c0, %c0_0, %c0_1] : memref<2x8x384xbf16, #tpu.memory_space<vmem>>, vector<2x8x384xbf16>
    %c0_2 = arith.constant 0 : index
    %c0_3 = arith.constant 0 : index
    %1 = vector.load %arg2[%c0_2, %c0_3] : memref<384x64xbf16, #tpu.memory_space<vmem>>, vector<384x64xbf16>
    %c0_4 = arith.constant 0 : index
    %c0_5 = arith.constant 0 : index
    %2 = vector.load %arg3[%c0_4, %c0_5] : memref<384x64xbf16, #tpu.memory_space<vmem>>, vector<384x64xbf16>
    %c0_6 = arith.constant 0 : index
    %c0_7 = arith.constant 0 : index
    %3 = vector.load %arg4[%c0_6, %c0_7] : memref<384x64xbf16, #tpu.memory_space<vmem>>, vector<384x64xbf16>
    %cst = arith.constant dense<0.000000e+00> : vector<2x8x64xf32>
    %4 = tpu.matmul %0, %1, %cst {dimension_numbers = #tpu.dot_dimension_numbers<[2], [0], [0, 1], [1], [0, 0, 0, 1, 1, 1], [], []>} : vector<2x8x384xbf16>, vector<384x64xbf16>, vector<2x8x64xf32> -> vector<2x8x64xf32>
    %cst_8 = arith.constant dense<0.000000e+00> : vector<2x8x64xf32>
    %5 = tpu.matmul %0, %2, %cst_8 {dimension_numbers = #tpu.dot_dimension_numbers<[2], [0], [0, 1], [1], [0, 0, 0, 1, 1, 1], [], []>} : vector<2x8x384xbf16>, vector<384x64xbf16>, vector<2x8x64xf32> -> vector<2x8x64xf32>
    %cst_9 = arith.constant dense<0.000000e+00> : vector<2x8x64xf32>
    %6 = tpu.matmul %0, %3, %cst_9 {dimension_numbers = #tpu.dot_dimension_numbers<[2], [0], [0, 1], [1], [0, 0, 0, 1, 1, 1], [], []>} : vector<2x8x384xbf16>, vector<384x64xbf16>, vector<2x8x64xf32> -> vector<2x8x64xf32>
    %7 = arith.truncf %5 : vector<2x8x64xf32> to vector<2x8x64xbf16>
    %8 = arith.truncf %4 : vector<2x8x64xf32> to vector<2x8x64xbf16>
    %cst_10 = arith.constant dense<0.000000e+00> : vector<2x8x8xf32>
    %9 = tpu.matmul %7, %8, %cst_10 {dimension_numbers = #tpu.dot_dimension_numbers<[2], [2], [1], [1], [0, 0, 0, 1, 1, 1], [0], [0]>} : vector<2x8x64xbf16>, vector<2x8x64xbf16>, vector<2x8x8xf32> -> vector<2x8x8xf32>
    %10 = tpu.iota {dimensions = array<i32: 0>} : vector<8x8xi32>
    %11 = tpu.iota {dimensions = array<i32: 1>} : vector<8x8xi32>
    %12 = arith.cmpi sle, %11, %10 : vector<8x8xi32>
    %13 = vector.shape_cast %12 : vector<8x8xi1> to vector<1x8x8xi1>
    %cst_11 = arith.constant 0xFF800000 : f32
    %14 = vector.shape_cast %13 : vector<1x8x8xi1> to vector<1x8x8xi1>
    %15 = vector.broadcast %14 : vector<1x8x8xi1> to vector<2x8x8xi1>
    %16 = vector.broadcast %cst_11 : f32 to vector<2x8x8xf32>
    %17 = arith.select %15, %9, %16 : vector<2x8x8xi1>, vector<2x8x8xf32>
    %cst_12 = arith.constant dense<0xFF800000> : vector<2x8xf32>
    %18 = vector.multi_reduction <maximumf>, %17, %cst_12 [2] : vector<2x8x8xf32> to vector<2x8xf32>
    %19 = vector.shape_cast %18 : vector<2x8xf32> to vector<2x8x1xf32>
    %20 = vector.broadcast %19 : vector<2x8x1xf32> to vector<2x8x8xf32>
    %21 = arith.subf %17, %20 : vector<2x8x8xf32>
    %22 = math.exp %21 : vector<2x8x8xf32>
    %cst_13 = arith.constant dense<0.000000e+00> : vector<2x8xf32>
    %23 = vector.multi_reduction <add>, %22, %cst_13 [2] : vector<2x8x8xf32> to vector<2x8xf32>
    %24 = vector.shape_cast %23 : vector<2x8xf32> to vector<2x8x1xf32>
    %25 = tpu.reciprocal %24 {approx = true} : vector<2x8x1xf32> -> vector<2x8x1xf32>
    %26 = vector.broadcast %25 : vector<2x8x1xf32> to vector<2x8x8xf32>
    %27 = arith.mulf %22, %26 : vector<2x8x8xf32>
    %28 = arith.truncf %27 : vector<2x8x8xf32> to vector<2x8x8xbf16>
    %29 = arith.truncf %6 : vector<2x8x64xf32> to vector<2x8x64xbf16>
    %cst_14 = arith.constant dense<0.000000e+00> : vector<2x8x64xf32>
    %30 = tpu.matmul %28, %29, %cst_14 {dimension_numbers = #tpu.dot_dimension_numbers<[2], [1], [1], [2], [0, 0, 0, 1, 1, 2], [0], [0]>} : vector<2x8x8xbf16>, vector<2x8x64xbf16>, vector<2x8x64xf32> -> vector<2x8x64xf32>
    %c0_15 = arith.constant 0 : index
    %c0_16 = arith.constant 0 : index
    %c0_17 = arith.constant 0 : index
    %31 = vector.load %arg5[%c0_15, %c0_16, %c0_17] : memref<2x8x64xf32, #tpu.memory_space<vmem>>, vector<2x8x64xf32>
    tpu.vector_store %arg5[%c0_15, %c0_16, %c0_17], %30 {strides = array<i32>} : memref<2x8x64xf32, #tpu.memory_space<vmem>>, vector<2x8x64xf32>,
    return
  }
  func.func @transform_0(%arg0: i32) -> (i32, i32, i32) {
    %c0_i32 = arith.constant 0 : i32
    %c0_i32_0 = arith.constant 0 : i32
    %c0_i32_1 = arith.constant 0 : i32
    return %arg0, %c0_i32, %c0_i32_0 : i32, i32, i32
  }
  func.func @transform_1(%arg0: i32) -> (i32, i32) {
    %c0_i32 = arith.constant 0 : i32
    %c0_i32_0 = arith.constant 0 : i32
    %c0_i32_1 = arith.constant 0 : i32
    return %c0_i32, %c0_i32_0 : i32, i32
  }
  func.func @transform_2(%arg0: i32) -> (i32, i32) {
    %c0_i32 = arith.constant 0 : i32
    %c0_i32_0 = arith.constant 0 : i32
    %c0_i32_1 = arith.constant 0 : i32
    return %c0_i32, %c0_i32_0 : i32, i32
  }
  func.func @transform_3(%arg0: i32) -> (i32, i32) {
    %c0_i32 = arith.constant 0 : i32
    %c0_i32_0 = arith.constant 0 : i32
    %c0_i32_1 = arith.constant 0 : i32
    return %c0_i32, %c0_i32_0 : i32, i32
  }
  func.func @transform_4(%arg0: i32) -> (i32, i32, i32) {
    %c0_i32 = arith.constant 0 : i32
    %c0_i32_0 = arith.constant 0 : i32
    %c0_i32_1 = arith.constant 0 : i32
    return %arg0, %c0_i32, %c0_i32_0 : i32, i32, i32
  }
}

</mosaic_0001>

<llo_original>
// kernel: tpu_custom_call.1
$region0: #{tpu_custom_call.1}
  #allocation0 [shape = 'u32[]', space=smem, size = 0x4, offset = 0x4, fixed_abs, tag = 'smem constant byte address 0x4 - core index']
  #allocation1 [shape = 'u32[144,128]{1,0:T(1,128)}', space=vmem, size = 0x12000, scoped, tag = 'internal scratch']
  %s0 = inlined_call_operand.vmem [shape: bf16[2,8,384], index: 0, kind: input, shape index: {}]
  %s1 = inlined_call_operand.vmem [shape: bf16[384,64], index: 1, kind: input, shape index: {}]
  %s2 = inlined_call_operand.vmem [shape: bf16[384,64], index: 2, kind: input, shape index: {}]
  %s3 = inlined_call_operand.vmem [shape: bf16[384,64], index: 3, kind: input, shape index: {}]
  %s4 = inlined_call_operand.hbm [shape: f32[2,8,64], index: 4, kind: output, shape index: {}]
  %s5 = sld [smem:[#allocation0]]
  $region26: #{tpu_custom_call.1} parent=0
    _
  %s7 = ssub.s32 1, %s5
  %s8 = scalar_select 0, %s7, %s5
  $region1: #{tpu_custom_call.1} parent=0
    #allocation2 [shape = 'u8[8192]{0}', space=vmem, size = 0x2000, scoped, tag = 'output window, operand 0, single buffered']
    #allocation3 [shape = 's32[1]{0}', space=sflag, size = 0x4, scoped, tag = 'scoped memory for tpu_custom_call.1']
    %9 = vsyncpa [#allocation3], 0
    // Predicated region
    $region2: #{tpu_custom_call.1} parent=1 // pred_check
      _
    $region3: #{tpu_custom_call.1} parent=1 // pred_check_branch
      %11 = sbr.rel (0) target = $region5
    $region4: #{tpu_custom_call.1} parent=1 // pred_region
      _
    $region5: #{tpu_custom_call.1} parent=1 // pred_fallthru
      _
    // Predicated region
    $region6: #{tpu_custom_call.1} parent=1 // pred_check
      _
    $region7: #{tpu_custom_call.1} parent=1 // pred_check_branch
      %13 = sbr.rel (0) target = $region9
    $region8: #{tpu_custom_call.1} parent=1 // pred_region
      _
    $region9: #{tpu_custom_call.1} parent=1 // pred_fallthru
      _
    // Predicated region
    $region10: #{tpu_custom_call.1} parent=1 // pred_check
      _
    $region11: #{tpu_custom_call.1} parent=1 // pred_check_branch
      %15 = sbr.rel (0) target = $region13
    $region12: #{tpu_custom_call.1} parent=1 // pred_region
      _
    $region13: #{tpu_custom_call.1} parent=1 // pred_fallthru
      _
    // Predicated region
    $region14: #{tpu_custom_call.1} parent=1 // pred_check
      _
    $region15: #{tpu_custom_call.1} parent=1 // pred_check_branch
      %17 = sbr.rel (0) target = $region17
    $region16: #{tpu_custom_call.1} parent=1 // pred_region
      _
    $region17: #{tpu_custom_call.1} parent=1 // pred_fallthru
      _
    %v19 = vld [vmem:[%s0] sm:$0xff]
    %v20 = vld [vmem:[%s0 + $0x8] sm:$0xf]
    %v21 = vld [vmem:[%s0 + $0xc] sm:$0xff]
    %v22 = vld [vmem:[%s0 + $0x14] sm:$0xf]
    %v23 = vld [vmem:[%s1] sm:$0xf]
    %v24 = vld [vmem:[%s1 + $0x4] sm:$0xf]
    %v25 = vld [vmem:[%s1 + $0x8] sm:$0xf]
    %v26 = vld [vmem:[%s1 + $0xc] sm:$0xf]
    %v27 = vld [vmem:[%s1 + $0x10] sm:$0xf]
    %v28 = vld [vmem:[%s1 + $0x14] sm:$0xf]
    %v29 = vld [vmem:[%s1 + $0x18] sm:$0xf]
    %v30 = vld [vmem:[%s1 + $0x1c] sm:$0xf]
    %v31 = vld [vmem:[%s1 + $0x20] sm:$0xf]
    %v32 = vld [vmem:[%s1 + $0x24] sm:$0xf]
    %v33 = vld [vmem:[%s1 + $0x28] sm:$0xf]
    %v34 = vld [vmem:[%s1 + $0x2c] sm:$0xf]
    %v35 = vld [vmem:[%s1 + $0x30] sm:$0xf]
    %v36 = vld [vmem:[%s1 + $0x34] sm:$0xf]
    %v37 = vld [vmem:[%s1 + $0x38] sm:$0xf]
    %v38 = vld [vmem:[%s1 + $0x3c] sm:$0xf]
    %v39 = vld [vmem:[%s1 + $0x40] sm:$0xf]
    %v40 = vld [vmem:[%s1 + $0x44] sm:$0xf]
    %v41 = vld [vmem:[%s1 + $0x48] sm:$0xf]
    %v42 = vld [vmem:[%s1 + $0x4c] sm:$0xf]
    %v43 = vld [vmem:[%s1 + $0x50] sm:$0xf]
    %v44 = vld [vmem:[%s1 + $0x54] sm:$0xf]
    %v45 = vld [vmem:[%s1 + $0x58] sm:$0xf]
    %v46 = vld [vmem:[%s1 + $0x5c] sm:$0xf]
    %v47 = vld [vmem:[%s1 + $0x60] sm:$0xf]
    %v48 = vld [vmem:[%s1 + $0x64] sm:$0xf]
    %v49 = vld [vmem:[%s1 + $0x68] sm:$0xf]
    %v50 = vld [vmem:[%s1 + $0x6c] sm:$0xf]
    %v51 = vld [vmem:[%s1 + $0x70] sm:$0xf]
    %v52 = vld [vmem:[%s1 + $0x74] sm:$0xf]
    %v53 = vld [vmem:[%s1 + $0x78] sm:$0xf]
    %v54 = vld [vmem:[%s1 + $0x7c] sm:$0xf]
    %v55 = vld [vmem:[%s1 + $0x80] sm:$0xf]
    %v56 = vld [vmem:[%s1 + $0x84] sm:$0xf]
    %v57 = vld [vmem:[%s1 + $0x88] sm:$0xf]
    %v58 = vld [vmem:[%s1 + $0x8c] sm:$0xf]
    %v59 = vld [vmem:[%s1 + $0x90] sm:$0xf]
    %v60 = vld [vmem:[%s1 + $0x94] sm:$0xf]
    %v61 = vld [vmem:[%s1 + $0x98] sm:$0xf]
    %v62 = vld [vmem:[%s1 + $0x9c] sm:$0xf]
    %v63 = vld [vmem:[%s1 + $0xa0] sm:$0xf]
    %v64 = vld [vmem:[%s1 + $0xa4] sm:$0xf]
    %v65 = vld [vmem:[%s1 + $0xa8] sm:$0xf]
    %v66 = vld [vmem:[%s1 + $0xac] sm:$0xf]
    %v67 = vld [vmem:[%s1 + $0xb0] sm:$0xf]
    %v68 = vld [vmem:[%s1 + $0xb4] sm:$0xf]
    %v69 = vld [vmem:[%s1 + $0xb8] sm:$0xf]
    %v70 = vld [vmem:[%s1 + $0xbc] sm:$0xf]
    %v71 = vld [vmem:[%s2] sm:$0xf]
    %v72 = vld [vmem:[%s2 + $0x4] sm:$0xf]
    %v73 = vld [vmem:[%s2 + $0x8] sm:$0xf]
    %v74 = vld [vmem:[%s2 + $0xc] sm:$0xf]
    %v75 = vld [vmem:[%s2 + $0x10] sm:$0xf]
    %v76 = vld [vmem:[%s2 + $0x14] sm:$0xf]
    %v77 = vld [vmem:[%s2 + $0x18] sm:$0xf]
    %v78 = vld [vmem:[%s2 + $0x1c] sm:$0xf]
    %v79 = vld [vmem:[%s2 + $0x20] sm:$0xf]
    %v80 = vld [vmem:[%s2 + $0x24] sm:$0xf]
    %v81 = vld [vmem:[%s2 + $0x28] sm:$0xf]
    %v82 = vld [vmem:[%s2 + $0x2c] sm:$0xf]
    %v83 = vld [vmem:[%s2 + $0x30] sm:$0xf]
    %v84 = vld [vmem:[%s2 + $0x34] sm:$0xf]
    %v85 = vld [vmem:[%s2 + $0x38] sm:$0xf]
    %v86 = vld [vmem:[%s2 + $0x3c] sm:$0xf]
    %v87 = vld [vmem:[%s2 + $0x40] sm:$0xf]
    %v88 = vld [vmem:[%s2 + $0x44] sm:$0xf]
    %v89 = vld [vmem:[%s2 + $0x48] sm:$0xf]
    %v90 = vld [vmem:[%s2 + $0x4c] sm:$0xf]
    %v91 = vld [vmem:[%s2 + $0x50] sm:$0xf]
    %v92 = vld [vmem:[%s2 + $0x54] sm:$0xf]
    %v93 = vld [vmem:[%s2 + $0x58] sm:$0xf]
    %v94 = vld [vmem:[%s2 + $0x5c] sm:$0xf]
    %v95 = vld [vmem:[%s2 + $0x60] sm:$0xf]
    %v96 = vld [vmem:[%s2 + $0x64] sm:$0xf]
    %v97 = vld [vmem:[%s2 + $0x68] sm:$0xf]
    %v98 = vld [vmem:[%s2 + $0x6c] sm:$0xf]
    %v99 = vld [vmem:[%s2 + $0x70] sm:$0xf]
    %v100 = vld [vmem:[%s2 + $0x74] sm:$0xf]
    %v101 = vld [vmem:[%s2 + $0x78] sm:$0xf]
    %v102 = vld [vmem:[%s2 + $0x7c] sm:$0xf]
    %v103 = vld [vmem:[%s2 + $0x80] sm:$0xf]
    %v104 = vld [vmem:[%s2 + $0x84] sm:$0xf]
    %v105 = vld [vmem:[%s2 + $0x88] sm:$0xf]
    %v106 = vld [vmem:[%s2 + $0x8c] sm:$0xf]
    %v107 = vld [vmem:[%s2 + $0x90] sm:$0xf]
    %v108 = vld [vmem:[%s2 + $0x94] sm:$0xf]
    %v109 = vld [vmem:[%s2 + $0x98] sm:$0xf]
    %v110 = vld [vmem:[%s2 + $0x9c] sm:$0xf]
    %v111 = vld [vmem:[%s2 + $0xa0] sm:$0xf]
    %v112 = vld [vmem:[%s2 + $0xa4] sm:$0xf]
    %v113 = vld [vmem:[%s2 + $0xa8] sm:$0xf]
    %v114 = vld [vmem:[%s2 + $0xac] sm:$0xf]
    %v115 = vld [vmem:[%s2 + $0xb0] sm:$0xf]
    %v116 = vld [vmem:[%s2 + $0xb4] sm:$0xf]
    %v117 = vld [vmem:[%s2 + $0xb8] sm:$0xf]
    %v118 = vld [vmem:[%s2 + $0xbc] sm:$0xf]
    %v119 = vld [vmem:[%s3] sm:$0xf]
    %v120 = vld [vmem:[%s3 + $0x4] sm:$0xf]
    %v121 = vld [vmem:[%s3 + $0x8] sm:$0xf]
    %v122 = vld [vmem:[%s3 + $0xc] sm:$0xf]
    %v123 = vld [vmem:[%s3 + $0x10] sm:$0xf]
    %v124 = vld [vmem:[%s3 + $0x14] sm:$0xf]
    %v125 = vld [vmem:[%s3 + $0x18] sm:$0xf]
    %v126 = vld [vmem:[%s3 + $0x1c] sm:$0xf]
    %v127 = vld [vmem:[%s3 + $0x20] sm:$0xf]
    %v128 = vld [vmem:[%s3 + $0x24] sm:$0xf]
    %v129 = vld [vmem:[%s3 + $0x28] sm:$0xf]
    %v130 = vld [vmem:[%s3 + $0x2c] sm:$0xf]
    %v131 = vld [vmem:[%s3 + $0x30] sm:$0xf]
    %v132 = vld [vmem:[%s3 + $0x34] sm:$0xf]
    %v133 = vld [vmem:[%s3 + $0x38] sm:$0xf]
    %v134 = vld [vmem:[%s3 + $0x3c] sm:$0xf]
    %v135 = vld [vmem:[%s3 + $0x40] sm:$0xf]
    %v136 = vld [vmem:[%s3 + $0x44] sm:$0xf]
    %v137 = vld [vmem:[%s3 + $0x48] sm:$0xf]
    %v138 = vld [vmem:[%s3 + $0x4c] sm:$0xf]
    %v139 = vld [vmem:[%s3 + $0x50] sm:$0xf]
    %v140 = vld [vmem:[%s3 + $0x54] sm:$0xf]
    %v141 = vld [vmem:[%s3 + $0x58] sm:$0xf]
    %v142 = vld [vmem:[%s3 + $0x5c] sm:$0xf]
    %v143 = vld [vmem:[%s3 + $0x60] sm:$0xf]
    %v144 = vld [vmem:[%s3 + $0x64] sm:$0xf]
    %v145 = vld [vmem:[%s3 + $0x68] sm:$0xf]
    %v146 = vld [vmem:[%s3 + $0x6c] sm:$0xf]
    %v147 = vld [vmem:[%s3 + $0x70] sm:$0xf]
    %v148 = vld [vmem:[%s3 + $0x74] sm:$0xf]
    %v149 = vld [vmem:[%s3 + $0x78] sm:$0xf]
    %v150 = vld [vmem:[%s3 + $0x7c] sm:$0xf]
    %v151 = vld [vmem:[%s3 + $0x80] sm:$0xf]
    %v152 = vld [vmem:[%s3 + $0x84] sm:$0xf]
    %v153 = vld [vmem:[%s3 + $0x88] sm:$0xf]
    %v154 = vld [vmem:[%s3 + $0x8c] sm:$0xf]
    %v155 = vld [vmem:[%s3 + $0x90] sm:$0xf]
    %v156 = vld [vmem:[%s3 + $0x94] sm:$0xf]
    %v157 = vld [vmem:[%s3 + $0x98] sm:$0xf]
    %v158 = vld [vmem:[%s3 + $0x9c] sm:$0xf]
    %v159 = vld [vmem:[%s3 + $0xa0] sm:$0xf]
    %v160 = vld [vmem:[%s3 + $0xa4] sm:$0xf]
    %v161 = vld [vmem:[%s3 + $0xa8] sm:$0xf]
    %v162 = vld [vmem:[%s3 + $0xac] sm:$0xf]
    %v163 = vld [vmem:[%s3 + $0xb0] sm:$0xf]
    %v164 = vld [vmem:[%s3 + $0xb4] sm:$0xf]
    %v165 = vld [vmem:[%s3 + $0xb8] sm:$0xf]
    %v166 = vld [vmem:[%s3 + $0xbc] sm:$0xf]
    %v171 = vunpack.c.l.b16 %v19
    %v172 = vunpack.c.h.b16 %v19
    %v173 = vunpack.c.l.b16 %v20
    %v174 = vunpack.c.l.b16 %v21
    %v175 = vunpack.c.h.b16 %v21
    %v176 = vunpack.c.l.b16 %v22
    %v177 = vpack.c.b16 %v174, %v171
    %v178 = vpack.c.b16 %v175, %v172
    %v179 = vpack.c.b16 %v176, %v173
    %v231 = vunpack.c.l.b16 %v23
    %v232 = vunpack.c.l.b16 %v24
    %v233 = vunpack.c.l.b16 %v25
    %v234 = vunpack.c.l.b16 %v26
    %v235 = vunpack.c.l.b16 %v27
    %v236 = vunpack.c.l.b16 %v28
    %v237 = vunpack.c.l.b16 %v29
    %v238 = vunpack.c.l.b16 %v30
    %v239 = vunpack.c.l.b16 %v31
    %v240 = vunpack.c.l.b16 %v32
    %v241 = vunpack.c.l.b16 %v33
    %v242 = vunpack.c.l.b16 %v34
    %v243 = vunpack.c.l.b16 %v35
    %v244 = vunpack.c.l.b16 %v36
    %v245 = vunpack.c.l.b16 %v37
    %v246 = vunpack.c.l.b16 %v38
    %v247 = vunpack.c.l.b16 %v39
    %v248 = vunpack.c.l.b16 %v40
    %v249 = vunpack.c.l.b16 %v41
    %v250 = vunpack.c.l.b16 %v42
    %v251 = vunpack.c.l.b16 %v43
    %v252 = vunpack.c.l.b16 %v44
    %v253 = vunpack.c.l.b16 %v45
    %v254 = vunpack.c.l.b16 %v46
    %v255 = vunpack.c.l.b16 %v47
    %v256 = vunpack.c.l.b16 %v48
    %v257 = vunpack.c.l.b16 %v49
    %v258 = vunpack.c.l.b16 %v50
    %v259 = vunpack.c.l.b16 %v51
    %v260 = vunpack.c.l.b16 %v52
    %v261 = vunpack.c.l.b16 %v53
    %v262 = vunpack.c.l.b16 %v54
    %v263 = vunpack.c.l.b16 %v55
    %v264 = vunpack.c.l.b16 %v56
    %v265 = vunpack.c.l.b16 %v57
    %v266 = vunpack.c.l.b16 %v58
    %v267 = vunpack.c.l.b16 %v59
    %v268 = vunpack.c.l.b16 %v60
    %v269 = vunpack.c.l.b16 %v61
    %v270 = vunpack.c.l.b16 %v62
    %v271 = vunpack.c.l.b16 %v63
    %v272 = vunpack.c.l.b16 %v64
    %v273 = vunpack.c.l.b16 %v65
    %v274 = vunpack.c.l.b16 %v66
    %v275 = vunpack.c.l.b16 %v67
    %v276 = vunpack.c.l.b16 %v68
    %v277 = vunpack.c.l.b16 %v69
    %v278 = vunpack.c.l.b16 %v70
    %v279 = vpack.c.b16 %v232, %v231
    %v280 = vpack.c.b16 %v234, %v233
    %v281 = vpack.c.b16 %v236, %v235
    %v282 = vpack.c.b16 %v238, %v237
    %v283 = vpack.c.b16 %v240, %v239
    %v284 = vpack.c.b16 %v242, %v241
    %v285 = vpack.c.b16 %v244, %v243
    %v286 = vpack.c.b16 %v246, %v245
    %v287 = vpack.c.b16 %v248, %v247
    %v288 = vpack.c.b16 %v250, %v249
    %v289 = vpack.c.b16 %v252, %v251
    %v290 = vpack.c.b16 %v254, %v253
    %v291 = vpack.c.b16 %v256, %v255
    %v292 = vpack.c.b16 %v258, %v257
    %v293 = vpack.c.b16 %v260, %v259
    %v294 = vpack.c.b16 %v262, %v261
    %v295 = vpack.c.b16 %v264, %v263
    %v296 = vpack.c.b16 %v266, %v265
    %v297 = vpack.c.b16 %v268, %v267
    %v298 = vpack.c.b16 %v270, %v269
    %v299 = vpack.c.b16 %v272, %v271
    %v300 = vpack.c.b16 %v274, %v273
    %v301 = vpack.c.b16 %v276, %v275
    %v302 = vpack.c.b16 %v278, %v277
    %327 = vmatprep.subr.bf16.mxu0 0
    %328 = vmatpush1.bf16.msra.mxu0 %v286
    %329 = vmatprep.subr.bf16.mxu0 0
    %330 = vmatpush1.bf16.msra.mxu0 %v285
    %331 = vmatprep.subr.bf16.mxu0 0
    %332 = vmatpush1.bf16.msra.mxu0 %v284
    %333 = vmatprep.subr.bf16.mxu0 0
    %334 = vmatpush1.bf16.msra.mxu0 %v283
    %335 = vmatprep.subr.bf16.mxu0 0
    %336 = vmatpush1.bf16.msra.mxu0 %v282
    %337 = vmatprep.subr.bf16.mxu0 0
    %338 = vmatpush1.bf16.msra.mxu0 %v281
    %339 = vmatprep.subr.bf16.mxu0 0
    %340 = vmatpush1.bf16.msra.mxu0 %v280
    %341 = vmatprep.subr.bf16.mxu0 0
    %342 = vmatpush1.bf16.msra.mxu0 %v279
    %343 = vmatprep.subr.bf16.mxu0 0
    %344 = vmatpush2.bf16.msra.mxu0 %v294
    %345 = vmatprep.subr.bf16.mxu0 0
    %346 = vmatpush2.bf16.msra.mxu0 %v293
    %347 = vmatprep.subr.bf16.mxu0 0
    %348 = vmatpush2.bf16.msra.mxu0 %v292
    %349 = vmatprep.subr.bf16.mxu0 0
    %350 = vmatpush2.bf16.msra.mxu0 %v291
    %351 = vmatprep.subr.bf16.mxu0 0
    %352 = vmatpush2.bf16.msra.mxu0 %v290
    %353 = vmatprep.subr.bf16.mxu0 0
    %354 = vmatpush2.bf16.msra.mxu0 %v289
    %355 = vmatprep.subr.bf16.mxu0 0
    %356 = vmatpush2.bf16.msra.mxu0 %v288
    %357 = vmatprep.subr.bf16.mxu0 0
    %358 = vmatpush2.bf16.msra.mxu0 %v287
    %359 = vmatprep.mubr.bf16.mxu0 %v178
    %360 = vmatmul.mubr.bf16.gmra.mxu0 %v177
    %v361 = vpop.f32.mrf.mxu0
    %v362 = vadd.f32 0.0, %v361
    %v363 = vpop.f32.mrf.mxu0
    %v364 = vpop.f32.mrf.mxu0
    %v365 = vadd.f32 0.0, %v364
    %v366 = vpop.f32.mrf.mxu0
    %367 = vdwg.mxu0
    %368 = vmatprep.subr.bf16.mxu0 0
    %369 = vmatpush1.bf16.msra.mxu0 %v302
    %370 = vmatprep.subr.bf16.mxu0 0
    %371 = vmatpush1.bf16.msra.mxu0 %v301
    %372 = vmatprep.subr.bf16.mxu0 0
    %373 = vmatpush1.bf16.msra.mxu0 %v300
    %374 = vmatprep.subr.bf16.mxu0 0
    %375 = vmatpush1.bf16.msra.mxu0 %v299
    %376 = vmatprep.subr.bf16.mxu0 0
    %377 = vmatpush1.bf16.msra.mxu0 %v298
    %378 = vmatprep.subr.bf16.mxu0 0
    %379 = vmatpush1.bf16.msra.mxu0 %v297
    %380 = vmatprep.subr.bf16.mxu0 0
    %381 = vmatpush1.bf16.msra.mxu0 %v296
    %382 = vmatprep.subr.bf16.mxu0 0
    %383 = vmatpush1.bf16.msra.mxu0 %v295
    %384 = vmatprep.subr.bf16.mxu0 0
    %385 = vmatpush2.bf16.msra.mxu0 0
    %386 = vmatprep.subr.bf16.mxu0 0
    %387 = vmatpush2.bf16.msra.mxu0 0
    %388 = vmatprep.subr.bf16.mxu0 0
    %389 = vmatpush2.bf16.msra.mxu0 0
    %390 = vmatprep.subr.bf16.mxu0 0
    %391 = vmatpush2.bf16.msra.mxu0 0
    %392 = vmatprep.subr.bf16.mxu0 0
    %393 = vmatpush2.bf16.msra.mxu0 0
    %394 = vmatprep.subr.bf16.mxu0 0
    %395 = vmatpush2.bf16.msra.mxu0 0
    %396 = vmatprep.subr.bf16.mxu0 0
    %397 = vmatpush2.bf16.msra.mxu0 0
    %398 = vmatprep.subr.bf16.mxu0 0
    %399 = vmatpush2.bf16.msra.mxu0 0
    %400 = vmatprep.mubr.bf16.mxu0 0
    %401 = vmatmul.mubr.bf16.gmra.mxu0 %v179
    %v402 = vpop.f32.mrf.mxu0
    %v403 = vadd.f32 %v362, %v402
    %v404 = vpop.f32.mrf.mxu0
    %v405 = vpop.f32.mrf.mxu0
    %v406 = vadd.f32 %v365, %v405
    %v407 = vpop.f32.mrf.mxu0
    %408 = vdwg.mxu0
    %v457 = vunpack.c.l.b16 %v71
    %v458 = vunpack.c.l.b16 %v72
    %v459 = vunpack.c.l.b16 %v73
    %v460 = vunpack.c.l.b16 %v74
    %v461 = vunpack.c.l.b16 %v75
    %v462 = vunpack.c.l.b16 %v76
    %v463 = vunpack.c.l.b16 %v77
    %v464 = vunpack.c.l.b16 %v78
    %v465 = vunpack.c.l.b16 %v79
    %v466 = vunpack.c.l.b16 %v80
    %v467 = vunpack.c.l.b16 %v81
    %v468 = vunpack.c.l.b16 %v82
    %v469 = vunpack.c.l.b16 %v83
    %v470 = vunpack.c.l.b16 %v84
    %v471 = vunpack.c.l.b16 %v85
    %v472 = vunpack.c.l.b16 %v86
    %v473 = vunpack.c.l.b16 %v87
    %v474 = vunpack.c.l.b16 %v88
    %v475 = vunpack.c.l.b16 %v89
    %v476 = vunpack.c.l.b16 %v90
    %v477 = vunpack.c.l.b16 %v91
    %v478 = vunpack.c.l.b16 %v92
    %v479 = vunpack.c.l.b16 %v93
    %v480 = vunpack.c.l.b16 %v94
    %v481 = vunpack.c.l.b16 %v95
    %v482 = vunpack.c.l.b16 %v96
    %v483 = vunpack.c.l.b16 %v97
    %v484 = vunpack.c.l.b16 %v98
    %v485 = vunpack.c.l.b16 %v99
    %v486 = vunpack.c.l.b16 %v100
    %v487 = vunpack.c.l.b16 %v101
    %v488 = vunpack.c.l.b16 %v102
    %v489 = vunpack.c.l.b16 %v103
    %v490 = vunpack.c.l.b16 %v104
    %v491 = vunpack.c.l.b16 %v105
    %v492 = vunpack.c.l.b16 %v106
    %v493 = vunpack.c.l.b16 %v107
    %v494 = vunpack.c.l.b16 %v108
    %v495 = vunpack.c.l.b16 %v109
    %v496 = vunpack.c.l.b16 %v110
    %v497 = vunpack.c.l.b16 %v111
    %v498 = vunpack.c.l.b16 %v112
    %v499 = vunpack.c.l.b16 %v113
    %v500 = vunpack.c.l.b16 %v114
    %v501 = vunpack.c.l.b16 %v115
    %v502 = vunpack.c.l.b16 %v116
    %v503 = vunpack.c.l.b16 %v117
    %v504 = vunpack.c.l.b16 %v118
    %v505 = vpack.c.b16 %v458, %v457
    %v506 = vpack.c.b16 %v460, %v459
    %v507 = vpack.c.b16 %v462, %v461
    %v508 = vpack.c.b16 %v464, %v463
    %v509 = vpack.c.b16 %v466, %v465
    %v510 = vpack.c.b16 %v468, %v467
    %v511 = vpack.c.b16 %v470, %v469
    %v512 = vpack.c.b16 %v472, %v471
    %v513 = vpack.c.b16 %v474, %v473
    %v514 = vpack.c.b16 %v476, %v475
    %v515 = vpack.c.b16 %v478, %v477
    %v516 = vpack.c.b16 %v480, %v479
    %v517 = vpack.c.b16 %v482, %v481
    %v518 = vpack.c.b16 %v484, %v483
    %v519 = vpack.c.b16 %v486, %v485
    %v520 = vpack.c.b16 %v488, %v487
    %v521 = vpack.c.b16 %v490, %v489
    %v522 = vpack.c.b16 %v492, %v491
    %v523 = vpack.c.b16 %v494, %v493
    %v524 = vpack.c.b16 %v496, %v495
    %v525 = vpack.c.b16 %v498, %v497
    %v526 = vpack.c.b16 %v500, %v499
    %v527 = vpack.c.b16 %v502, %v501
    %v528 = vpack.c.b16 %v504, %v503
    %553 = vmatprep.subr.bf16.mxu0 0
    %554 = vmatpush1.bf16.msra.mxu0 %v512
    %555 = vmatprep.subr.bf16.mxu0 0
    %556 = vmatpush1.bf16.msra.mxu0 %v511
    %557 = vmatprep.subr.bf16.mxu0 0
    %558 = vmatpush1.bf16.msra.mxu0 %v510
    %559 = vmatprep.subr.bf16.mxu0 0
    %560 = vmatpush1.bf16.msra.mxu0 %v509
    %561 = vmatprep.subr.bf16.mxu0 0
    %562 = vmatpush1.bf16.msra.mxu0 %v508
    %563 = vmatprep.subr.bf16.mxu0 0
    %564 = vmatpush1.bf16.msra.mxu0 %v507
    %565 = vmatprep.subr.bf16.mxu0 0
    %566 = vmatpush1.bf16.msra.mxu0 %v506
    %567 = vmatprep.subr.bf16.mxu0 0
    %568 = vmatpush1.bf16.msra.mxu0 %v505
    %569 = vmatprep.subr.bf16.mxu0 0
    %570 = vmatpush2.bf16.msra.mxu0 %v520
    %571 = vmatprep.subr.bf16.mxu0 0
    %572 = vmatpush2.bf16.msra.mxu0 %v519
    %573 = vmatprep.subr.bf16.mxu0 0
    %574 = vmatpush2.bf16.msra.mxu0 %v518
    %575 = vmatprep.subr.bf16.mxu0 0
    %576 = vmatpush2.bf16.msra.mxu0 %v517
    %577 = vmatprep.subr.bf16.mxu0 0
    %578 = vmatpush2.bf16.msra.mxu0 %v516
    %579 = vmatprep.subr.bf16.mxu0 0
    %580 = vmatpush2.bf16.msra.mxu0 %v515
    %581 = vmatprep.subr.bf16.mxu0 0
    %582 = vmatpush2.bf16.msra.mxu0 %v514
    %583 = vmatprep.subr.bf16.mxu0 0
    %584 = vmatpush2.bf16.msra.mxu0 %v513
    %585 = vmatprep.mubr.bf16.mxu0 %v178
    %586 = vmatmul.mubr.bf16.gmra.mxu0 %v177
    %v587 = vpop.f32.mrf.mxu0
    %v588 = vadd.f32 0.0, %v587
    %v589 = vpop.f32.mrf.mxu0
    %v590 = vpop.f32.mrf.mxu0
    %v591 = vadd.f32 0.0, %v590
    %v592 = vpop.f32.mrf.mxu0
    %593 = vdwg.mxu0
    %594 = vmatprep.subr.bf16.mxu0 0
    %595 = vmatpush1.bf16.msra.mxu0 %v528
    %596 = vmatprep.subr.bf16.mxu0 0
    %597 = vmatpush1.bf16.msra.mxu0 %v527
    %598 = vmatprep.subr.bf16.mxu0 0
    %599 = vmatpush1.bf16.msra.mxu0 %v526
    %600 = vmatprep.subr.bf16.mxu0 0
    %601 = vmatpush1.bf16.msra.mxu0 %v525
    %602 = vmatprep.subr.bf16.mxu0 0
    %603 = vmatpush1.bf16.msra.mxu0 %v524
    %604 = vmatprep.subr.bf16.mxu0 0
    %605 = vmatpush1.bf16.msra.mxu0 %v523
    %606 = vmatprep.subr.bf16.mxu0 0
    %607 = vmatpush1.bf16.msra.mxu0 %v522
    %608 = vmatprep.subr.bf16.mxu0 0
    %609 = vmatpush1.bf16.msra.mxu0 %v521
    %610 = vmatprep.subr.bf16.mxu0 0
    %611 = vmatpush2.bf16.msra.mxu0 0
    %612 = vmatprep.subr.bf16.mxu0 0
    %613 = vmatpush2.bf16.msra.mxu0 0
    %614 = vmatprep.subr.bf16.mxu0 0
    %615 = vmatpush2.bf16.msra.mxu0 0
    %616 = vmatprep.subr.bf16.mxu0 0
    %617 = vmatpush2.bf16.msra.mxu0 0
    %618 = vmatprep.subr.bf16.mxu0 0
    %619 = vmatpush2.bf16.msra.mxu0 0
    %620 = vmatprep.subr.bf16.mxu0 0
    %621 = vmatpush2.bf16.msra.mxu0 0
    %622 = vmatprep.subr.bf16.mxu0 0
    %623 = vmatpush2.bf16.msra.mxu0 0
    %624 = vmatprep.subr.bf16.mxu0 0
    %625 = vmatpush2.bf16.msra.mxu0 0
    %626 = vmatprep.mubr.bf16.mxu0 0
    %627 = vmatmul.mubr.bf16.gmra.mxu0 %v179
    %v628 = vpop.f32.mrf.mxu0
    %v629 = vadd.f32 %v588, %v628
    %v630 = vpop.f32.mrf.mxu0
    %v631 = vpop.f32.mrf.mxu0
    %v632 = vadd.f32 %v591, %v631
    %v633 = vpop.f32.mrf.mxu0
    %634 = vdwg.mxu0
    %v683 = vunpack.c.l.b16 %v119
    %v684 = vunpack.c.l.b16 %v120
    %v685 = vunpack.c.l.b16 %v121
    %v686 = vunpack.c.l.b16 %v122
    %v687 = vunpack.c.l.b16 %v123
    %v688 = vunpack.c.l.b16 %v124
    %v689 = vunpack.c.l.b16 %v125
    %v690 = vunpack.c.l.b16 %v126
    %v691 = vunpack.c.l.b16 %v127
    %v692 = vunpack.c.l.b16 %v128
    %v693 = vunpack.c.l.b16 %v129
    %v694 = vunpack.c.l.b16 %v130
    %v695 = vunpack.c.l.b16 %v131
    %v696 = vunpack.c.l.b16 %v132
    %v697 = vunpack.c.l.b16 %v133
    %v698 = vunpack.c.l.b16 %v134
    %v699 = vunpack.c.l.b16 %v135
    %v700 = vunpack.c.l.b16 %v136
    %v701 = vunpack.c.l.b16 %v137
    %v702 = vunpack.c.l.b16 %v138
    %v703 = vunpack.c.l.b16 %v139
    %v704 = vunpack.c.l.b16 %v140
    %v705 = vunpack.c.l.b16 %v141
    %v706 = vunpack.c.l.b16 %v142
    %v707 = vunpack.c.l.b16 %v143
    %v708 = vunpack.c.l.b16 %v144
    %v709 = vunpack.c.l.b16 %v145
    %v710 = vunpack.c.l.b16 %v146
    %v711 = vunpack.c.l.b16 %v147
    %v712 = vunpack.c.l.b16 %v148
    %v713 = vunpack.c.l.b16 %v149
    %v714 = vunpack.c.l.b16 %v150
    %v715 = vunpack.c.l.b16 %v151
    %v716 = vunpack.c.l.b16 %v152
    %v717 = vunpack.c.l.b16 %v153
    %v718 = vunpack.c.l.b16 %v154
    %v719 = vunpack.c.l.b16 %v155
    %v720 = vunpack.c.l.b16 %v156
    %v721 = vunpack.c.l.b16 %v157
    %v722 = vunpack.c.l.b16 %v158
    %v723 = vunpack.c.l.b16 %v159
    %v724 = vunpack.c.l.b16 %v160
    %v725 = vunpack.c.l.b16 %v161
    %v726 = vunpack.c.l.b16 %v162
    %v727 = vunpack.c.l.b16 %v163
    %v728 = vunpack.c.l.b16 %v164
    %v729 = vunpack.c.l.b16 %v165
    %v730 = vunpack.c.l.b16 %v166
    %v731 = vpack.c.b16 %v684, %v683
    %v732 = vpack.c.b16 %v686, %v685
    %v733 = vpack.c.b16 %v688, %v687
    %v734 = vpack.c.b16 %v690, %v689
    %v735 = vpack.c.b16 %v692, %v691
    %v736 = vpack.c.b16 %v694, %v693
    %v737 = vpack.c.b16 %v696, %v695
    %v738 = vpack.c.b16 %v698, %v697
    %v739 = vpack.c.b16 %v700, %v699
    %v740 = vpack.c.b16 %v702, %v701
    %v741 = vpack.c.b16 %v704, %v703
    %v742 = vpack.c.b16 %v706, %v705
    %v743 = vpack.c.b16 %v708, %v707
    %v744 = vpack.c.b16 %v710, %v709
    %v745 = vpack.c.b16 %v712, %v711
    %v746 = vpack.c.b16 %v714, %v713
    %v747 = vpack.c.b16 %v716, %v715
    %v748 = vpack.c.b16 %v718, %v717
    %v749 = vpack.c.b16 %v720, %v719
    %v750 = vpack.c.b16 %v722, %v721
    %v751 = vpack.c.b16 %v724, %v723
    %v752 = vpack.c.b16 %v726, %v725
    %v753 = vpack.c.b16 %v728, %v727
    %v754 = vpack.c.b16 %v730, %v729
    %779 = vmatprep.subr.bf16.mxu0 0
    %780 = vmatpush1.bf16.msra.mxu0 %v738
    %781 = vmatprep.subr.bf16.mxu0 0
    %782 = vmatpush1.bf16.msra.mxu0 %v737
    %783 = vmatprep.subr.bf16.mxu0 0
    %784 = vmatpush1.bf16.msra.mxu0 %v736
    %785 = vmatprep.subr.bf16.mxu0 0
    %786 = vmatpush1.bf16.msra.mxu0 %v735
    %787 = vmatprep.subr.bf16.mxu0 0
    %788 = vmatpush1.bf16.msra.mxu0 %v734
    %789 = vmatprep.subr.bf16.mxu0 0
    %790 = vmatpush1.bf16.msra.mxu0 %v733
    %791 = vmatprep.subr.bf16.mxu0 0
    %792 = vmatpush1.bf16.msra.mxu0 %v732
    %793 = vmatprep.subr.bf16.mxu0 0
    %794 = vmatpush1.bf16.msra.mxu0 %v731
    %795 = vmatprep.subr.bf16.mxu0 0
    %796 = vmatpush2.bf16.msra.mxu0 %v746
    %797 = vmatprep.subr.bf16.mxu0 0
    %798 = vmatpush2.bf16.msra.mxu0 %v745
    %799 = vmatprep.subr.bf16.mxu0 0
    %800 = vmatpush2.bf16.msra.mxu0 %v744
    %801 = vmatprep.subr.bf16.mxu0 0
    %802 = vmatpush2.bf16.msra.mxu0 %v743
    %803 = vmatprep.subr.bf16.mxu0 0
    %804 = vmatpush2.bf16.msra.mxu0 %v742
    %805 = vmatprep.subr.bf16.mxu0 0
    %806 = vmatpush2.bf16.msra.mxu0 %v741
    %807 = vmatprep.subr.bf16.mxu0 0
    %808 = vmatpush2.bf16.msra.mxu0 %v740
    %809 = vmatprep.subr.bf16.mxu0 0
    %810 = vmatpush2.bf16.msra.mxu0 %v739
    %811 = vmatprep.mubr.bf16.mxu0 %v178
    %812 = vmatmul.mubr.bf16.gmra.mxu0 %v177
    %v813 = vpop.f32.mrf.mxu0
    %v814 = vadd.f32 0.0, %v813
    %v815 = vpop.f32.mrf.mxu0
    %v816 = vpop.f32.mrf.mxu0
    %v817 = vadd.f32 0.0, %v816
    %v818 = vpop.f32.mrf.mxu0
    %819 = vdwg.mxu0
    %820 = vmatprep.subr.bf16.mxu0 0
    %821 = vmatpush1.bf16.msra.mxu0 %v754
    %822 = vmatprep.subr.bf16.mxu0 0
    %823 = vmatpush1.bf16.msra.mxu0 %v753
    %824 = vmatprep.subr.bf16.mxu0 0
    %825 = vmatpush1.bf16.msra.mxu0 %v752
    %826 = vmatprep.subr.bf16.mxu0 0
    %827 = vmatpush1.bf16.msra.mxu0 %v751
    %828 = vmatprep.subr.bf16.mxu0 0
    %829 = vmatpush1.bf16.msra.mxu0 %v750
    %830 = vmatprep.subr.bf16.mxu0 0
    %831 = vmatpush1.bf16.msra.mxu0 %v749
    %832 = vmatprep.subr.bf16.mxu0 0
    %833 = vmatpush1.bf16.msra.mxu0 %v748
    %834 = vmatprep.subr.bf16.mxu0 0
    %835 = vmatpush1.bf16.msra.mxu0 %v747
    %836 = vmatprep.subr.bf16.mxu0 0
    %837 = vmatpush2.bf16.msra.mxu0 0
    %838 = vmatprep.subr.bf16.mxu0 0
    %839 = vmatpush2.bf16.msra.mxu0 0
    %840 = vmatprep.subr.bf16.mxu0 0
    %841 = vmatpush2.bf16.msra.mxu0 0
    %842 = vmatprep.subr.bf16.mxu0 0
    %843 = vmatpush2.bf16.msra.mxu0 0
    %844 = vmatprep.subr.bf16.mxu0 0
    %845 = vmatpush2.bf16.msra.mxu0 0
    %846 = vmatprep.subr.bf16.mxu0 0
    %847 = vmatpush2.bf16.msra.mxu0 0
    %848 = vmatprep.subr.bf16.mxu0 0
    %849 = vmatpush2.bf16.msra.mxu0 0
    %850 = vmatprep.subr.bf16.mxu0 0
    %851 = vmatpush2.bf16.msra.mxu0 0
    %852 = vmatprep.mubr.bf16.mxu0 0
    %853 = vmatmul.mubr.bf16.gmra.mxu0 %v179
    %v854 = vpop.f32.mrf.mxu0
    %v855 = vadd.f32 %v814, %v854
    %v856 = vpop.f32.mrf.mxu0
    %v857 = vpop.f32.mrf.mxu0
    %v858 = vadd.f32 %v817, %v857
    %v859 = vpop.f32.mrf.mxu0
    %860 = vdwg.mxu0
    %v861 = vpack.c.bf16 %v629, %v629
    %v862 = vpack.c.bf16 %v632, %v632
    %v863 = vpack.c.bf16 %v403, %v403
    %v864 = vpack.c.bf16 %v406, %v406
    %vm865 = vcmask 523264
    %v867 = vsel %vm865, %v861, 0
    %v870 = vsel %vm865, %v863, 0
    %872 = vmatprep.subr.bf16.mxu0 0
    %873 = vmatpush1.bf16.xpose.msra.mxu0 0
    %874 = vmatprep.subr.bf16.mxu0 0
    %875 = vmatpush1.bf16.xpose.msra.mxu0 0
    %876 = vmatprep.subr.bf16.mxu0 0
    %877 = vmatpush1.bf16.xpose.msra.mxu0 0
    %878 = vmatprep.subr.bf16.mxu0 0
    %879 = vmatpush1.bf16.xpose.msra.mxu0 0
    %880 = vmatprep.subr.bf16.mxu0 0
    %881 = vmatpush1.bf16.xpose.msra.mxu0 0
    %882 = vmatprep.subr.bf16.mxu0 0
    %883 = vmatpush1.bf16.xpose.msra.mxu0 0
    %884 = vmatprep.subr.bf16.mxu0 0
    %885 = vmatpush1.bf16.xpose.msra.mxu0 0
    %886 = vmatprep.subr.bf16.mxu0 0
    %887 = vmatpush1.bf16.xpose.msra.mxu0 %v870
    %888 = vmatprep.subr.bf16.mxu0 0
    %889 = vmatpush2.bf16.xpose.msra.mxu0 0
    %890 = vmatprep.subr.bf16.mxu0 0
    %891 = vmatpush2.bf16.xpose.msra.mxu0 0
    %892 = vmatprep.subr.bf16.mxu0 0
    %893 = vmatpush2.bf16.xpose.msra.mxu0 0
    %894 = vmatprep.subr.bf16.mxu0 0
    %895 = vmatpush2.bf16.xpose.msra.mxu0 0
    %896 = vmatprep.subr.bf16.mxu0 0
    %897 = vmatpush2.bf16.xpose.msra.mxu0 0
    %898 = vmatprep.subr.bf16.mxu0 0
    %899 = vmatpush2.bf16.xpose.msra.mxu0 0
    %900 = vmatprep.subr.bf16.mxu0 0
    %901 = vmatpush2.bf16.xpose.msra.mxu0 0
    %902 = vmatprep.subr.bf16.mxu0 0
    %903 = vmatpush2.bf16.xpose.msra.mxu0 0
    %904 = vmatprep.mubr.bf16.mxu0 0
    %905 = vmatmul.mubr.bf16.gmra.mxu0 %v867
    %v906 = vpop.f32.mrf.mxu0
    %v907 = vadd.f32 0.0, %v906
    %v908 = vpop.f32.mrf.mxu0
    %v909 = vpop.f32.mrf.mxu0
    %v910 = vpop.f32.mrf.mxu0
    %911 = vdwg.mxu0
    %v913 = vsel %vm865, %v862, 0
    %v916 = vsel %vm865, %v864, 0
    %918 = vmatprep.subr.bf16.mxu0 0
    %919 = vmatpush1.bf16.xpose.msra.mxu0 0
    %920 = vmatprep.subr.bf16.mxu0 0
    %921 = vmatpush1.bf16.xpose.msra.mxu0 0
    %922 = vmatprep.subr.bf16.mxu0 0
    %923 = vmatpush1.bf16.xpose.msra.mxu0 0
    %924 = vmatprep.subr.bf16.mxu0 0
    %925 = vmatpush1.bf16.xpose.msra.mxu0 0
    %926 = vmatprep.subr.bf16.mxu0 0
    %927 = vmatpush1.bf16.xpose.msra.mxu0 0
    %928 = vmatprep.subr.bf16.mxu0 0
    %929 = vmatpush1.bf16.xpose.msra.mxu0 0
    %930 = vmatprep.subr.bf16.mxu0 0
    %931 = vmatpush1.bf16.xpose.msra.mxu0 0
    %932 = vmatprep.subr.bf16.mxu0 0
    %933 = vmatpush1.bf16.xpose.msra.mxu0 %v916
    %934 = vmatprep.subr.bf16.mxu0 0
    %935 = vmatpush2.bf16.xpose.msra.mxu0 0
    %936 = vmatprep.subr.bf16.mxu0 0
    %937 = vmatpush2.bf16.xpose.msra.mxu0 0
    %938 = vmatprep.subr.bf16.mxu0 0
    %939 = vmatpush2.bf16.xpose.msra.mxu0 0
    %940 = vmatprep.subr.bf16.mxu0 0
    %941 = vmatpush2.bf16.xpose.msra.mxu0 0
    %942 = vmatprep.subr.bf16.mxu0 0
    %943 = vmatpush2.bf16.xpose.msra.mxu0 0
    %944 = vmatprep.subr.bf16.mxu0 0
    %945 = vmatpush2.bf16.xpose.msra.mxu0 0
    %946 = vmatprep.subr.bf16.mxu0 0
    %947 = vmatpush2.bf16.xpose.msra.mxu0 0
    %948 = vmatprep.subr.bf16.mxu0 0
    %949 = vmatpush2.bf16.xpose.msra.mxu0 0
    %950 = vmatprep.mubr.bf16.mxu0 0
    %951 = vmatmul.mubr.bf16.gmra.mxu0 %v913
    %v952 = vpop.f32.mrf.mxu0
    %v953 = vadd.f32 0.0, %v952
    %v954 = vpop.f32.mrf.mxu0
    %v955 = vpop.f32.mrf.mxu0
    %v956 = vpop.f32.mrf.mxu0
    %957 = vdwg.mxu0
    %v958 = vlaneseq
    %v959 = vshrl.u32 %v958, 7
    %v960 = vlaneseq
    %v961 = vand.u32 %v960, 127
    %vm962 = vcmp.le.s32.totalorder %v961, %v959
    %v963 = vsel %vm962, 1, 0
    %vm964 = vcmp.eq.s32.totalorder %v963, 1
    %v965 = vsel %vm964, %v907, -inf
    %v966 = vsel %vm964, %v953, -inf
    %vm967 = vcmask 64512
    %v968 = vsel %vm967, %v965, -inf
    %969 = vmax.xlane.f32.xlu0 %v968
    %v970 = vpop.xlane.xlu0 %969
    %v971 = vsel %vm967, %v966, -inf
    %972 = vmax.xlane.f32.xlu0 %v971
    %v973 = vpop.xlane.xlu0 %972
    %v974 = vsub.f32 %v965, %v970
    %v975 = vsub.f32 %v966, %v973
    %v976 = vmul.f32 %v974, 1.442695
    %v977 = vpow.pop %v976
    %v978 = vmul.f32 %v975, 1.442695
    %v979 = vpow.pop %v978
    %v980 = vsel %vm967, %v977, 0.0
    %981 = vadd.xlane.f32.xlu0 %v980
    %v982 = vpop.xlane.xlu0 %981
    %v983 = vsel %vm967, %v979, 0.0
    %984 = vadd.xlane.f32.xlu0 %v983
    %v985 = vpop.xlane.xlu0 %984
    %v986 = vrcp.pop %v982
    %v987 = vrcp.pop %v985
    %v988 = vmul.f32 %v977, %v986
    %v989 = vmul.f32 %v979, %v987
    %v990 = vpack.c.bf16 %v988, %v988
    %v991 = vpack.c.bf16 %v989, %v989
    %v992 = vpack.c.bf16 %v855, %v855
    %v993 = vpack.c.bf16 %v858, %v858
    %v995 = vsel %vm967, %v990, 0
    %vm997 = vcmask 1043456
    %v999 = vsel %vm997, %v992, 0
    %1001 = vmatprep.subr.bf16.mxu0 0
    %1002 = vmatpush1.bf16.msra.mxu0 0
    %1003 = vmatprep.subr.bf16.mxu0 0
    %1004 = vmatpush1.bf16.msra.mxu0 0
    %1005 = vmatprep.subr.bf16.mxu0 0
    %1006 = vmatpush1.bf16.msra.mxu0 0
    %1007 = vmatprep.subr.bf16.mxu0 0
    %1008 = vmatpush1.bf16.msra.mxu0 0
    %1009 = vmatprep.subr.bf16.mxu0 0
    %1010 = vmatpush1.bf16.msra.mxu0 0
    %1011 = vmatprep.subr.bf16.mxu0 0
    %1012 = vmatpush1.bf16.msra.mxu0 0
    %1013 = vmatprep.subr.bf16.mxu0 0
    %1014 = vmatpush1.bf16.msra.mxu0 0
    %1015 = vmatprep.subr.bf16.mxu0 0
    %1016 = vmatpush1.bf16.msra.mxu0 %v999
    %1017 = vmatprep.subr.bf16.mxu0 0
    %1018 = vmatpush2.bf16.msra.mxu0 0
    %1019 = vmatprep.subr.bf16.mxu0 0
    %1020 = vmatpush2.bf16.msra.mxu0 0
    %1021 = vmatprep.subr.bf16.mxu0 0
    %1022 = vmatpush2.bf16.msra.mxu0 0
    %1023 = vmatprep.subr.bf16.mxu0 0
    %1024 = vmatpush2.bf16.msra.mxu0 0
    %1025 = vmatprep.subr.bf16.mxu0 0
    %1026 = vmatpush2.bf16.msra.mxu0 0
    %1027 = vmatprep.subr.bf16.mxu0 0
    %1028 = vmatpush2.bf16.msra.mxu0 0
    %1029 = vmatprep.subr.bf16.mxu0 0
    %1030 = vmatpush2.bf16.msra.mxu0 0
    %1031 = vmatprep.subr.bf16.mxu0 0
    %1032 = vmatpush2.bf16.msra.mxu0 0
    %1033 = vmatprep.mubr.bf16.mxu0 0
    %1034 = vmatmul.mubr.bf16.gmra.mxu0 %v995
    %v1035 = vpop.f32.mrf.mxu0
    %v1036 = vadd.f32 0.0, %v1035
    %v1037 = vpop.f32.mrf.mxu0
    %v1038 = vpop.f32.mrf.mxu0
    %v1039 = vpop.f32.mrf.mxu0
    %1040 = vdwg.mxu0
    %v1042 = vsel %vm967, %v991, 0
    %v1045 = vsel %vm997, %v993, 0
    %1047 = vmatprep.subr.bf16.mxu0 0
    %1048 = vmatpush1.bf16.msra.mxu0 0
    %1049 = vmatprep.subr.bf16.mxu0 0
    %1050 = vmatpush1.bf16.msra.mxu0 0
    %1051 = vmatprep.subr.bf16.mxu0 0
    %1052 = vmatpush1.bf16.msra.mxu0 0
    %1053 = vmatprep.subr.bf16.mxu0 0
    %1054 = vmatpush1.bf16.msra.mxu0 0
    %1055 = vmatprep.subr.bf16.mxu0 0
    %1056 = vmatpush1.bf16.msra.mxu0 0
    %1057 = vmatprep.subr.bf16.mxu0 0
    %1058 = vmatpush1.bf16.msra.mxu0 0
    %1059 = vmatprep.subr.bf16.mxu0 0
    %1060 = vmatpush1.bf16.msra.mxu0 0
    %1061 = vmatprep.subr.bf16.mxu0 0
    %1062 = vmatpush1.bf16.msra.mxu0 %v1045
    %1063 = vmatprep.subr.bf16.mxu0 0
    %1064 = vmatpush2.bf16.msra.mxu0 0
    %1065 = vmatprep.subr.bf16.mxu0 0
    %1066 = vmatpush2.bf16.msra.mxu0 0
    %1067 = vmatprep.subr.bf16.mxu0 0
    %1068 = vmatpush2.bf16.msra.mxu0 0
    %1069 = vmatprep.subr.bf16.mxu0 0
    %1070 = vmatpush2.bf16.msra.mxu0 0
    %1071 = vmatprep.subr.bf16.mxu0 0
    %1072 = vmatpush2.bf16.msra.mxu0 0
    %1073 = vmatprep.subr.bf16.mxu0 0
    %1074 = vmatpush2.bf16.msra.mxu0 0
    %1075 = vmatprep.subr.bf16.mxu0 0
    %1076 = vmatpush2.bf16.msra.mxu0 0
    %1077 = vmatprep.subr.bf16.mxu0 0
    %1078 = vmatpush2.bf16.msra.mxu0 0
    %1079 = vmatprep.mubr.bf16.mxu0 0
    %1080 = vmatmul.mubr.bf16.gmra.mxu0 %v1042
    %v1081 = vpop.f32.mrf.mxu0
    %v1082 = vadd.f32 0.0, %v1081
    %v1083 = vpop.f32.mrf.mxu0
    %v1084 = vpop.f32.mrf.mxu0
    %v1085 = vpop.f32.mrf.mxu0
    %1086 = vdwg.mxu0
    %1087 = vst.msk [vmem:[#allocation2] sm:$0xff] %vm865, %v1036
    %1088 = vst.msk [vmem:[#allocation2 + $0x8] sm:$0xff] %vm865, %v1082
    // Predicated region
    $region18: #{tpu_custom_call.1} parent=1 // pred_check
      _
    $region19: #{tpu_custom_call.1} parent=1 // pred_check_branch
      %1090 = sbr.rel (0) target = $region21
    $region20: #{tpu_custom_call.1} parent=1 // pred_region
      %s1092 = ssub.s32 256, 256
      %1093 = vsyncadd [#allocation3], %s1092
      %s1094 = sshll.u32 [#allocation2], 4
      %s1095 = int_to_ptr.vmem [resolvable:$true] %s1094
      %1100 = dma.vmem_to_hbm [thread:$0]  %s1095, 256, %s4, [#allocation3], 128, 128, 8
    $region21: #{tpu_custom_call.1} parent=1 // pred_fallthru
      _
    // Predicated region
    $region22: #{tpu_custom_call.1} parent=1 // pred_check
      _
    $region23: #{tpu_custom_call.1} parent=1 // pred_check_branch
      %1102 = sbr.rel (0) target = $region25
    $region24: #{tpu_custom_call.1} parent=1 // pred_region
      %1103 = dma.done [#allocation3], 256
    $region25: #{tpu_custom_call.1} parent=1 // pred_fallthru
      _
    %1104 = vsyncpa [#allocation3], 1

</llo_original>
